<compile_context>
chip_gen: v5e
topology: v5e:2x2
jax: 0.10.0
libtpu: 0.0.40
codegen_flags: <defaults>
</compile_context>

<pallas_src>
import functools
import math

import jax
import jax.numpy as jnp
from jax import lax
from jax.experimental import pallas as pl
from jax.experimental.pallas import tpu as pltpu

X_MIN = 1e-6
Y_MIN = 1e-4
LOG_Y_MIN = math.log(Y_MIN)


def _cdiv(a, b):
    return (a + b - 1) // b


def _round_down(a, b):
    return (a // b) * b


def _device_kind():
    try:
        return jax.devices()[0].device_kind.lower()
    except Exception:
        return ""


def _min_sublanes(dtypes):
    """Minimum second-minor block size: 8 for 32-bit, 16 for bf16, 32 for 8-bit."""
    m = 8
    for dt in dtypes:
        itemsize = jnp.dtype(dt).itemsize
        m = max(m, 8 * max(1, 4 // max(itemsize, 1)))
    return m


def _default_block_bytes(n_streamed, kind):
    """Per-step f32-equivalent block budget (block_n * C * 4 bytes)."""
    if "v5" in kind:
        # v5e: slower HBM -> per-step overhead is already small; modest blocks.
        return (4 << 20) if n_streamed == 1 else (2 << 20)
    # v6e / v7x / unknown: bigger blocks to amortize the ~0.35us per-step cost.
    return (6 << 20) if n_streamed == 1 else (4 << 20)


def _plan(n_rows, n_cls, min_sub, block_bytes, num_splits):
    """Returns (block_n, acc_rows, num_splits, steps_per_split, needs_mask)."""
    if n_rows < min_sub:
        # Tiny batch: take the whole (full-dim) block; no masking needed.
        acc_rows = 8 if n_rows % 8 == 0 else 1
        return n_rows, acc_rows, 1, 1, False
    row_bytes_f32 = n_cls * 4  # budget on the f32 intermediates, not input dtype
    budget_rows = max(min_sub, block_bytes // max(row_bytes_f32, 1))
    block_n = min(_round_down(budget_rows, min_sub), _round_down(n_rows, min_sub))
    block_n = max(block_n, min_sub)
    steps_total = _cdiv(n_rows, block_n)
    needs_mask = (n_rows % block_n) != 0
    num_splits = max(int(num_splits), 1)
    if num_splits > 1 and steps_total % num_splits != 0:
        # Keep every grid point mapped to a real block (no fully-OOB tiles).
        num_splits = 1
    return block_n, 8, num_splits, steps_total // num_splits, needs_mask


def _tile_partial_sum(v, acc_rows):
    """(block_n, C) -> (acc_rows, C) partial sum via a two-stage reduction so the
    adds do not form a single serial vreg dependency chain."""
    rows, cols = v.shape
    if acc_rows == 1:
        return jnp.sum(v, axis=0, keepdims=True)
    groups = rows // acc_rows
    if groups == 1:
        return v
    for g in (8, 4, 2):
        if groups % g == 0 and groups >= 2 * g:
            # Stage 1: fold chunks of g*acc_rows rows (g independent add chains).
            v = jnp.sum(v.reshape(groups // g, g * acc_rows, cols), axis=0)
            # Stage 2: fold the g surviving row-groups (short chain).
            return jnp.sum(v.reshape(g, acc_rows, cols), axis=0)
    return jnp.sum(v.reshape(groups, acc_rows, cols), axis=0)


# --------------------------------------------------------------------------- #
# Kernels
# --------------------------------------------------------------------------- #
def _soft_label_kernel(x_ref, y_ref, a_ref, b_ref, *, acc_rows, n_rows, block_n,
                       steps_per_split, steps_total, needs_mask):
    """Raw sums: a += sum(y*log x), b += sum(x*log y) over this (block_n, C) tile."""
    s = pl.program_id(0)
    i = pl.program_id(1)
    blk = s * steps_per_split + i

    def accumulate(masked):
        xc = jnp.clip(x_ref[...].astype(jnp.float32), X_MIN, 1.0)
        yc = jnp.clip(y_ref[...].astype(jnp.float32), Y_MIN, 1.0)
        if masked:
            rows = lax.broadcasted_iota(jnp.int32, xc.shape, 0)
            valid = rows < (n_rows - blk * block_n)
            xc = jnp.where(valid, xc, 1.0)  # log(1)=0, 1*0=0 -> pad rows add 0
            yc = jnp.where(valid, yc, 1.0)
        a_ref[...] += _tile_partial_sum(yc * jnp.log(xc), acc_rows)
        b_ref[...] += _tile_partial_sum(xc * jnp.log(yc), acc_rows)

    @pl.when(i == 0)
    def _():
        a_ref[...] = jnp.zeros_like(a_ref)
        b_ref[...] = jnp.zeros_like(b_ref)

    if needs_mask:
        is_last = blk == steps_total - 1

        @pl.when(jnp.logical_not(is_last))
        def _():
            accumulate(False)

        @pl.when(is_last)
        def _():
            accumulate(True)
    else:
        accumulate(False)


def _int_label_kernel(x_ref, a_ref, b_ref, *, acc_rows, n_rows, block_n,
                      steps_per_split, steps_total, needs_mask):
    """One-hot fast path background sums: a += sum(log clamp(x)), b += sum(clamp(x))."""
    s = pl.program_id(0)
    i = pl.program_id(1)
    blk = s * steps_per_split + i

    def accumulate(masked):
        xc = jnp.clip(x_ref[...].astype(jnp.float32), X_MIN, 1.0)
        if masked:
            rows = lax.broadcasted_iota(jnp.int32, xc.shape, 0)
            valid = rows < (n_rows - blk * block_n)
            x_log = jnp.where(valid, xc, 1.0)  # log(1)=0 -> pad rows add 0
            x_lin = jnp.where(valid, xc, 0.0)
        else:
            x_log = xc
            x_lin = xc
        a_ref[...] += _tile_partial_sum(jnp.log(x_log), acc_rows)
        b_ref[...] += _tile_partial_sum(x_lin, acc_rows)

    @pl.when(i == 0)
    def _():
        a_ref[...] = jnp.zeros_like(a_ref)
        b_ref[...] = jnp.zeros_like(b_ref)

    if needs_mask:
        is_last = blk == steps_total - 1

        @pl.when(jnp.logical_not(is_last))
        def _():
            accumulate(False)

        @pl.when(is_last)
        def _():
            accumulate(True)
    else:
        accumulate(False)


# --------------------------------------------------------------------------- #
# Wrapper
# --------------------------------------------------------------------------- #
def _run_partial_sums(kernel, inputs, n_cls, block_n, acc_rows, num_splits,
                      steps_per_split, cost_estimate, vmem_limit_bytes):
    def in_idx(s, i):
        return (s * steps_per_split + i, 0)

    def out_idx(s, i):
        return (s, 0)

    out_struct = jax.ShapeDtypeStruct((num_splits * acc_rows, n_cls), jnp.float32)
    a, b = pl.pallas_call(
        kernel,
        out_shape=(out_struct, out_struct),
        grid_spec=pl.GridSpec(
            grid=(num_splits, steps_per_split),
            in_specs=[pl.BlockSpec((block_n, n_cls), in_idx) for _ in inputs],
            out_specs=(pl.BlockSpec((acc_rows, n_cls), out_idx),
                       pl.BlockSpec((acc_rows, n_cls), out_idx)),
        ),
        compiler_params=pltpu.CompilerParams(
            dimension_semantics=("parallel", "arbitrary"),
            vmem_limit_bytes=vmem_limit_bytes,
        ),
        cost_estimate=cost_estimate,
    )(*inputs)
    return jnp.sum(a), jnp.sum(b)


def symmetry_nl_loss(x, y, alpha=0.1, beta=1.0, reduction="mean", *,
                     block_bytes=None, num_partials=None):
    """x: (N, C) probabilities; y: (N,) int labels or (N, C) soft labels."""
    assert x.ndim == 2, "expects x of shape (N, C)"
    if reduction != "mean":
        # TODO(synk): reduction='none' (per-row loss vector) needs a row-structured
        # output kernel; only the default reduction='mean' is implemented here.
        raise NotImplementedError("only reduction='mean' is implemented")

    n, c = x.shape
    alpha = float(alpha)
    beta = float(beta)
    int_path = (y.shape != x.shape)
    streamed = (x,) if int_path else (x, y)

    kind = _device_kind()
    if num_partials is None:
        num_partials = 2 if "v7" in kind else 1  # dual-TC chips only
    if block_bytes is None:
        block_bytes = _default_block_bytes(len(streamed), kind)

    min_sub = _min_sublanes([a.dtype for a in streamed])
    block_n, acc_rows, num_splits, steps_per_split, needs_mask = _plan(
        n, c, min_sub, block_bytes, num_partials)
    steps_total = num_splits * steps_per_split

    itemsizes = [jnp.dtype(a.dtype).itemsize for a in streamed]
    elems = n * c
    out_bytes = 2 * num_splits * acc_rows * c * 4
    # Generous scoped-VMEM budget: double-buffered input blocks + live f32
    # intermediates; kept under v7x's 64 MiB physical per-TC VMEM for sane C.
    f32_block = block_n * c * 4
    n_temps = 3 if int_path else 5
    vmem_need = (2 * sum(block_n * c * it for it in itemsizes)
                 + n_temps * f32_block + 2 * out_bytes + (4 << 20))
    vmem_limit = int(min(max(vmem_need, 48 << 20), 112 << 20))

    common = dict(acc_rows=acc_rows, n_rows=n, block_n=block_n,
                  steps_per_split=steps_per_split, steps_total=steps_total,
                  needs_mask=needs_mask)

    if int_path:
        cost = pl.CostEstimate(
            flops=6 * elems, transcendentals=elems,
            bytes_accessed=n * c * itemsizes[0] + out_bytes)
        kernel = functools.partial(_int_label_kernel, **common)
        a_sum, b_sum = _run_partial_sums(kernel, [x], c, block_n, acc_rows,
                                         num_splits, steps_per_split, cost,
                                         vmem_limit)
        # a_sum = sum(log clamp(x)), b_sum = sum(clamp(x)) over ALL elements.
        background = -alpha * Y_MIN * a_sum - beta * LOG_Y_MIN * b_sum
        # O(N) target-entry correction (tiny gather, plain JAX). Assumes labels
        # are valid in [0, C).
        # TODO(synk): for very small C, fuse this correction into the kernel
        # (stream labels) so the target column of x is not re-read from HBM.
        labels = y.astype(jnp.int32)
        xt = jnp.take_along_axis(x, labels[:, None], axis=1)[:, 0]
        xt = jnp.clip(xt.astype(jnp.float32), X_MIN, 1.0)
        loss_sum = (background
                    - alpha * (1.0 - Y_MIN) * jnp.sum(jnp.log(xt))
                    + beta * LOG_Y_MIN * jnp.sum(xt))
    else:
        cost = pl.CostEstimate(
            flops=10 * elems, transcendentals=2 * elems,
            bytes_accessed=n * c * (itemsizes[0] + itemsizes[1]) + out_bytes)
        kernel = functools.partial(_soft_label_kernel, **common)
        a_sum, b_sum = _run_partial_sums(kernel, [x, y], c, block_n, acc_rows,
                                         num_splits, steps_per_split, cost,
                                         vmem_limit)
        # a_sum = sum(y*log x), b_sum = sum(x*log y): negate & scale once here.
        loss_sum = -(alpha * a_sum + beta * b_sum)

    return loss_sum / jnp.float32(n)


# --------------------------------------------------------------------------- #
# Pure-JAX reference (mirrors the PyTorch module)
# --------------------------------------------------------------------------- #
def _reference(x, y, alpha=0.1, beta=1.0):
    n, c = x.shape
    if y.shape != x.shape:
        y = jax.nn.one_hot(y, c, dtype=x.dtype)
    x = jnp.clip(x.astype(jnp.float32), X_MIN, 1.0)
    y = jnp.clip(y.astype(jnp.float32), Y_MIN, 1.0)
    ce = -jnp.sum(y * jnp.log(x), axis=-1)
    rce = -jnp.sum(x * jnp.log(y), axis=-1)
    return jnp.mean(alpha * ce + beta * rce)


if __name__ == "__main__":
    key = jax.random.PRNGKey(0)
    k1, k2, k3, k4, k5, k6, k7, k8, k9 = jax.random.split(key, 9)

    # --- 1) small case, integer labels (fast path, single block) ---
    N, C = 8, 16
    x = jax.nn.softmax(jax.random.normal(k1, (N, C), dtype=jnp.float32), axis=-1)
    y_int = jax.random.randint(k2, (N,), 0, C)
    out1 = jax.block_until_ready(symmetry_nl_loss(x, y_int, alpha=0.1, beta=1.0))
    ref1 = _reference(x, y_int, alpha=0.1, beta=1.0)
    assert jnp.allclose(out1, ref1, rtol=1e-4, atol=1e-4), (out1, ref1)

    # --- 2) small case, soft labels (general path) ---
    y_soft = jax.nn.softmax(jax.random.normal(k3, (N, C), dtype=jnp.float32), axis=-1)
    out2 = jax.block_until_ready(symmetry_nl_loss(x, y_soft, alpha=0.1, beta=1.0))
    ref2 = _reference(x, y_soft, alpha=0.1, beta=1.0)
    assert jnp.allclose(out2, ref2, rtol=1e-4, atol=1e-4), (out2, ref2)

    # --- 3) ragged N (masked last tile) + multi-step + 2 parallel splits ---
    N2, C2 = 60, 256
    x2 = jax.nn.softmax(jax.random.normal(k4, (N2, C2), dtype=jnp.float32), axis=-1)
    y2 = jax.random.randint(k5, (N2,), 0, C2)
    out3 = jax.block_until_ready(
        symmetry_nl_loss(x2, y2, alpha=0.1, beta=1.0,
                         block_bytes=16 * 1024, num_partials=2))
    ref3 = _reference(x2, y2, alpha=0.1, beta=1.0)
    assert jnp.allclose(out3, ref3, rtol=1e-4, atol=1e-4), (out3, ref3)

    # --- 4) bf16 soft labels, N not a multiple of 16 (dtype-aware tiling + mask) ---
    N3, C3 = 24, 100
    x3 = jax.nn.softmax(jax.random.normal(k6, (N3, C3), dtype=jnp.float32),
                        axis=-1).astype(jnp.bfloat16)
    y3 = jax.nn.softmax(jax.random.normal(k7, (N3, C3), dtype=jnp.float32),
                        axis=-1).astype(jnp.bfloat16)
    out4 = jax.block_until_ready(
        symmetry_nl_loss(x3, y3, alpha=0.1, beta=1.0,
                         block_bytes=8 * 1024, num_partials=1))
    ref4 = _reference(x3, y3, alpha=0.1, beta=1.0)
    assert jnp.allclose(out4, ref4, rtol=2e-3, atol=2e-3), (out4, ref4)

    # --- 5) larger block (exercises the two-stage in-tile reduction) ---
    N4, C4 = 256, 128
    x4 = jax.nn.softmax(jax.random.normal(k8, (N4, C4), dtype=jnp.float32), axis=-1)
    y4 = jax.random.randint(k9, (N4,), 0, C4)
    out5 = jax.block_until_ready(symmetry_nl_loss(x4, y4, alpha=0.1, beta=1.0))
    ref5 = _reference(x4, y4, alpha=0.1, beta=1.0)
    assert jnp.allclose(out5, ref5, rtol=1e-4, atol=1e-4), (out5, ref5)

    print("KERNEL_OK")
</pallas_src>

<mosaic_0001>
module attributes {stable_mosaic.version = 11 : i64} {
  func.func @_int_label_kernel(%arg0: i32, %arg1: i32, %arg2: memref<8x16xf32, #tpu.memory_space<vmem>>, %arg3: memref<8x16xf32, #tpu.memory_space<vmem>>, %arg4: memref<8x16xf32, #tpu.memory_space<vmem>>) attributes {dimension_semantics = [#tpu.dimension_semantics<parallel>, #tpu.dimension_semantics<arbitrary>], iteration_bounds = array<i64: 1, 1>, scalar_prefetch = 0 : i64, scratch_operands = 0 : i64, tpu.core_type = #tpu.core_type<tc>, window_params = [{transform_indices = @transform_0, window_bounds = array<i64: 8, 16>}, {transform_indices = @transform_1, window_bounds = array<i64: 8, 16>}, {transform_indices = @transform_2, window_bounds = array<i64: 8, 16>}]} {
    %c0_i32 = arith.constant 0 : i32
    %0 = arith.cmpi eq, %arg1, %c0_i32 : i32
    %1 = arith.extui %0 : i1 to i32
    %c0_i32_0 = arith.constant 0 : i32
    %2 = arith.cmpi ne, %1, %c0_i32_0 : i32
    scf.if %2 {
      %cst_11 = arith.constant 0.000000e+00 : f32
      %15 = vector.broadcast %cst_11 : f32 to vector<8x16xf32>
      %c0_12 = arith.constant 0 : index
      %c0_13 = arith.constant 0 : index
      %16 = vector.load %arg3[%c0_12, %c0_13] : memref<8x16xf32, #tpu.memory_space<vmem>>, vector<8x16xf32>
      tpu.vector_store %arg3[%c0_12, %c0_13], %15 {strides = array<i32>} : memref<8x16xf32, #tpu.memory_space<vmem>>, vector<8x16xf32>,
      %cst_14 = arith.constant 0.000000e+00 : f32
      %17 = vector.broadcast %cst_14 : f32 to vector<8x16xf32>
      %c0_15 = arith.constant 0 : index
      %c0_16 = arith.constant 0 : index
      %18 = vector.load %arg4[%c0_15, %c0_16] : memref<8x16xf32, #tpu.memory_space<vmem>>, vector<8x16xf32>
      tpu.vector_store %arg4[%c0_15, %c0_16], %17 {strides = array<i32>} : memref<8x16xf32, #tpu.memory_space<vmem>>, vector<8x16xf32>,
    } else {
    }
    %c0 = arith.constant 0 : index
    %c0_1 = arith.constant 0 : index
    %3 = vector.load %arg2[%c0, %c0_1] : memref<8x16xf32, #tpu.memory_space<vmem>>, vector<8x16xf32>
    %cst = arith.constant 9.99999997E-7 : f32
    %cst_2 = arith.constant 1.000000e+00 : f32
    %4 = vector.broadcast %cst : f32 to vector<8x16xf32>
    %5 = arith.maximumf %4, %3 : vector<8x16xf32>
    %6 = vector.broadcast %cst_2 : f32 to vector<8x16xf32>
    %7 = arith.minimumf %6, %5 : vector<8x16xf32>
    %c0_3 = arith.constant 0 : index
    %c0_4 = arith.constant 0 : index
    %8 = vector.load %arg3[%c0_3, %c0_4] : memref<8x16xf32, #tpu.memory_space<vmem>>, vector<8x16xf32>
    %9 = math.log %7 : vector<8x16xf32>
    %10 = arith.addf %8, %9 : vector<8x16xf32>
    %c0_5 = arith.constant 0 : index
    %c0_6 = arith.constant 0 : index
    %11 = vector.load %arg3[%c0_5, %c0_6] : memref<8x16xf32, #tpu.memory_space<vmem>>, vector<8x16xf32>
    tpu.vector_store %arg3[%c0_5, %c0_6], %10 {strides = array<i32>} : memref<8x16xf32, #tpu.memory_space<vmem>>, vector<8x16xf32>,
    %c0_7 = arith.constant 0 : index
    %c0_8 = arith.constant 0 : index
    %12 = vector.load %arg4[%c0_7, %c0_8] : memref<8x16xf32, #tpu.memory_space<vmem>>, vector<8x16xf32>
    %13 = arith.addf %12, %7 : vector<8x16xf32>
    %c0_9 = arith.constant 0 : index
    %c0_10 = arith.constant 0 : index
    %14 = vector.load %arg4[%c0_9, %c0_10] : memref<8x16xf32, #tpu.memory_space<vmem>>, vector<8x16xf32>
    tpu.vector_store %arg4[%c0_9, %c0_10], %13 {strides = array<i32>} : memref<8x16xf32, #tpu.memory_space<vmem>>, vector<8x16xf32>,
    return
  }
  func.func @transform_0(%arg0: i32, %arg1: i32) -> (i32, i32) {
    %c1_i32 = arith.constant 1 : i32
    %0 = arith.muli %arg0, %c1_i32 : i32
    %1 = arith.addi %0, %arg1 : i32
    %c0_i32 = arith.constant 0 : i32
    %c0_i32_0 = arith.constant 0 : i32
    return %1, %c0_i32 : i32, i32
  }
  func.func @transform_1(%arg0: i32, %arg1: i32) -> (i32, i32) {
    %c0_i32 = arith.constant 0 : i32
    %c0_i32_0 = arith.constant 0 : i32
    return %arg0, %c0_i32 : i32, i32
  }
  func.func @transform_2(%arg0: i32, %arg1: i32) -> (i32, i32) {
    %c0_i32 = arith.constant 0 : i32
    %c0_i32_0 = arith.constant 0 : i32
    return %arg0, %c0_i32 : i32, i32
  }
}

</mosaic_0001>

<llo_original>
// kernel: tpu_custom_call.1
$region0: #{tpu_custom_call.1}
  #allocation0 [shape = 'u32[]', space=smem, size = 0x4, offset = 0x4, fixed_abs, tag = 'smem constant byte address 0x4 - core index']
  #allocation1 [shape = 'u32[72,128]{1,0:T(1,128)}', space=vmem, size = 0x9000, scoped, tag = 'internal scratch']
  %s0 = inlined_call_operand.hbm [shape: f32[8,16], index: 0, kind: input, shape index: {}]
  %s1 = inlined_call_operand.hbm [shape: f32[8,16], index: 1, kind: output, shape index: {0}]
  %s2 = inlined_call_operand.hbm [shape: f32[8,16], index: 2, kind: output, shape index: {1}]
  %3 = xla_tuple %s1, %s2
  %s4 = sld [smem:[#allocation0]]
  $region30: #{tpu_custom_call.1} parent=0
    _
  %s6 = ssub.s32 1, %s4
  %s7 = scalar_select 0, %s6, %s4
  $region1: #{tpu_custom_call.1} parent=0
    #allocation2 [shape = 'u8[4096]{0}', space=vmem, size = 0x1000, scoped, tag = 'input window, operand 0, single buffered']
    #allocation3 [shape = 's32[1]{0}', space=sflag, size = 0x4, scoped, tag = 'scoped memory for tpu_custom_call.1']
    #allocation4 [shape = 's32[1]{0}', space=sflag, size = 0x4, scoped, tag = 'scoped memory for tpu_custom_call.1']
    #allocation5 [shape = 'u8[4096]{0}', space=vmem, size = 0x1000, scoped, tag = 'output window, operand 0, single buffered']
    #allocation6 [shape = 'u8[4096]{0}', space=vmem, size = 0x1000, scoped, tag = 'output window, operand 1, single buffered']
    #allocation7 [shape = 's32[1]{0}', space=sflag, size = 0x4, scoped, tag = 'scoped memory for tpu_custom_call.1']
    %8 = vsyncpa [#allocation3], 0
    %9 = vsyncpa [#allocation4], 0
    %10 = vsyncpa [#allocation7], 0
    // Predicated region
    $region2: #{tpu_custom_call.1} parent=1 // pred_check
      _
    $region3: #{tpu_custom_call.1} parent=1 // pred_check_branch
      %12 = sbr.rel (0) target = $region5
    $region4: #{tpu_custom_call.1} parent=1 // pred_region
      %s13 = sadd.s32 0, 0
      %15 = vsyncadd [#allocation3], 0
      %s16 = smul.addr %s13, 8
      %s17 = scalar_lea.hbm %s0, %s16
      %s19 = sshll.u32 %s17, 4
      %s20 = int_to_ptr.hbm [resolvable:$true] %s19
      %s21 = sshll.u32 [#allocation2], 4
      %s22 = int_to_ptr.vmem [resolvable:$true] %s21
      %24 = dma.hbm_to_vmem [thread:$0]  %s20, 128, %s22, [#allocation3]
    $region5: #{tpu_custom_call.1} parent=1 // pred_fallthru
      _
    // Predicated region
    $region6: #{tpu_custom_call.1} parent=1 // pred_check
      _
    $region7: #{tpu_custom_call.1} parent=1 // pred_check_branch
      %26 = sbr.rel (0) target = $region9
    $region8: #{tpu_custom_call.1} parent=1 // pred_region
      %28 = dma.done [#allocation3], 128
    $region9: #{tpu_custom_call.1} parent=1 // pred_fallthru
      _
    %s29 = sadd.s32 0, 0
    %p30 = scmp.eq.s32.totalorder 0, 0
    // Predicated region
    $region10: #{tpu_custom_call.1} parent=1 // pred_check
      %p31 = pneg %p30
    $region11: #{tpu_custom_call.1} parent=1 // pred_check_branch
      %33 = sbr.rel (%p31) target = $region13
    $region12: #{tpu_custom_call.1} parent=1 // pred_region
      %vm34 = vcmask 130048
      %35 = vst.msk [vmem:[#allocation5] sm:$0xff] %vm34, 0.0
      %36 = vst.msk [vmem:[#allocation6] sm:$0xff] %vm34, 0.0
    $region13: #{tpu_custom_call.1} parent=1 // pred_fallthru
      _
    %v37 = vld [vmem:[#allocation2] sm:$0xff]
    %v38 = vmax.f32 %v37, 1e-06
    %v39 = vmin.f32 %v38, 1.0
    %v40 = vld [vmem:[#allocation5] sm:$0xff]
    %v41 = vlog2.pop %v39
    %v42 = vmul.f32 %v41, 0.6931472
    %v43 = vadd.f32 %v40, %v42
    %vm44 = vcmask 130048
    %45 = vst.msk [vmem:[#allocation5] sm:$0xff] %vm44, %v43
    %v46 = vld [vmem:[#allocation6] sm:$0xff]
    %v47 = vadd.f32 %v46, %v39
    %48 = vst.msk [vmem:[#allocation6] sm:$0xff] %vm44, %v47
    // Predicated region
    $region14: #{tpu_custom_call.1} parent=1 // pred_check
      _
    $region15: #{tpu_custom_call.1} parent=1 // pred_check_branch
      %50 = sbr.rel (0) target = $region17
    $region16: #{tpu_custom_call.1} parent=1 // pred_region
      %52 = vsyncadd [#allocation4], 0
      %s54 = sshll.u32 [#allocation5], 4
      %s55 = int_to_ptr.vmem [resolvable:$true] %s54
      %s56 = sshll.u32 %s1, 4
      %s57 = int_to_ptr.hbm [resolvable:$true] %s56
      %59 = dma.vmem_to_hbm [thread:$0]  %s55, 128, %s57, [#allocation4]
    $region17: #{tpu_custom_call.1} parent=1 // pred_fallthru
      _
    // Predicated region
    $region18: #{tpu_custom_call.1} parent=1 // pred_check
      _
    $region19: #{tpu_custom_call.1} parent=1 // pred_check_branch
      %61 = sbr.rel (0) target = $region21
    $region20: #{tpu_custom_call.1} parent=1 // pred_region
      %63 = vsyncadd [#allocation7], 0
      %s65 = sshll.u32 [#allocation6], 4
      %s66 = int_to_ptr.vmem [resolvable:$true] %s65
      %s67 = sshll.u32 %s2, 4
      %s68 = int_to_ptr.hbm [resolvable:$true] %s67
      %70 = dma.vmem_to_hbm [thread:$0]  %s66, 128, %s68, [#allocation7]
    $region21: #{tpu_custom_call.1} parent=1 // pred_fallthru
      _
    // Predicated region
    $region22: #{tpu_custom_call.1} parent=1 // pred_check
      _
    $region23: #{tpu_custom_call.1} parent=1 // pred_check_branch
      %72 = sbr.rel (0) target = $region25
    $region24: #{tpu_custom_call.1} parent=1 // pred_region
      %74 = dma.done [#allocation4], 128
    $region25: #{tpu_custom_call.1} parent=1 // pred_fallthru
      _
    // Predicated region
    $region26: #{tpu_custom_call.1} parent=1 // pred_check
      _
    $region27: #{tpu_custom_call.1} parent=1 // pred_check_branch
      %76 = sbr.rel (0) target = $region29
    $region28: #{tpu_custom_call.1} parent=1 // pred_region
      %78 = dma.done [#allocation7], 128
    $region29: #{tpu_custom_call.1} parent=1 // pred_fallthru
      _
    %79 = vsyncpa [#allocation3], 1
    %80 = vsyncpa [#allocation4], 1
    %81 = vsyncpa [#allocation7], 1

</llo_original>
